<compile_context>
chip_gen: v7x
topology: tpu7x:2x2x1
jax: 0.10.0
libtpu: 0.0.40
codegen_flags: <defaults>
</compile_context>

<pallas_src>
import functools

import jax
import jax.numpy as jnp
import numpy as np
from jax.experimental import pallas as pl
from jax.experimental.pallas import tpu as pltpu


def _round_up(x, m):
    return (x + m - 1) // m * m


def _cdiv(a, b):
    return (a + b - 1) // b


def _default_sqrt_in_low_precision():
    """bf16 sqrt only where the EUP has a native bf16 path (v6e / v7x)."""
    try:
        kind = jax.devices()[0].device_kind.lower()
    except Exception:  # pragma: no cover - defensive
        return False
    return ("v6" in kind) or ("v7" in kind)


def _activation(x, mxu_dtype, power_transform, sqrt_in_low_precision):
    """Fused optional power transform + cast to the MXU feed dtype."""
    if power_transform:
        # NOTE: sqrt assumes a non-negative (post-ReLU) embedding, same as the PyTorch module.
        if sqrt_in_low_precision and mxu_dtype != jnp.float32:
            # v6e/v7x: bf16-native EUP -> half the sqrt vreg passes and half the VMEM temp.
            x = jnp.sqrt(x.astype(mxu_dtype))
        else:
            # v5e: no bf16 EUP path; keep the sqrt in f32 (hidden under the HBM DMA anyway).
            x = jnp.sqrt(x)
    return x.astype(mxu_dtype)


# ------------------------- kernels -------------------------


def _cout_on_lanes_kernel(x_ref, w_ref, b_ref, o_ref, *, power_transform,
                          sqrt_in_low_precision):
    # Small-T path.
    # x_ref: (tm, C)  w_ref: (C, Cout_l) mxu dtype  b_ref: (1, Cout_l) f32  o_ref: (tm, Cout_l)
    x = _activation(x_ref[...], w_ref.dtype, power_transform, sqrt_in_low_precision)
    acc = jnp.dot(x, w_ref[...], preferred_element_type=jnp.float32)   # (tm, Cout_l) f32
    o_ref[...] = (acc + b_ref[...]).astype(o_ref.dtype)


def _t_on_lanes_kernel(x_ref, w_ref, b_ref, o_ref, *, power_transform,
                       sqrt_in_low_precision):
    # Large-T path (native NCHW layout).
    # x_ref: (1, C, tt)  w_ref: (tc, C) mxu dtype  b_ref: (tc, 1) f32  o_ref: (1, tc, tt)
    x = _activation(x_ref[0], w_ref.dtype, power_transform, sqrt_in_low_precision)
    acc = jnp.dot(w_ref[...], x, preferred_element_type=jnp.float32)   # (tc, tt) f32
    o_ref[0] = (acc + b_ref[...]).astype(o_ref.dtype)                  # bias bcast over lanes


# ------------------------- wrapper -------------------------


def prepare_encoding_params(weight, bias, *, mxu_dtype=jnp.bfloat16):
    """Pad + cast the Conv2d(1x1) weight/bias ONCE (module-init time).

    weight: (Cout, Cin, 1, 1) PyTorch Conv2d layout.  bias: (Cout,).
    Returns both weight layouts (they are tiny); hoists the per-call pad/cast flagged by the
    perf review out of the forward path.
    """
    Cout, C = int(weight.shape[0]), int(weight.shape[1])
    assert weight.shape == (Cout, C, 1, 1), "only kernel_size=(1,1) is implemented"
    w2d = jnp.asarray(weight)[:, :, 0, 0].astype(jnp.float32)
    b1d = jnp.asarray(bias).astype(jnp.float32)

    # (Cout_s, C): T-on-lanes (large-T) layout; Cout padded to a sublane multiple.
    cout_s = _round_up(Cout, 8)
    w_oc = jnp.pad(w2d, ((0, cout_s - Cout), (0, 0))).astype(mxu_dtype)
    b_col = jnp.pad(b1d, (0, cout_s - Cout)).reshape(cout_s, 1)

    # (C, Cout_l): Cout-on-lanes (small-T) layout; Cout padded to a lane multiple (>=128)
    # so output stores are unmasked / lane-dense.
    cout_l = _round_up(Cout, 128)
    w_co = jnp.pad(w2d.T, ((0, 0), (0, cout_l - Cout))).astype(mxu_dtype)
    b_row = jnp.pad(b1d, (0, cout_l - Cout)).reshape(1, cout_l)

    return {"w_oc": w_oc, "b_col": b_col, "w_co": w_co, "b_row": b_row}


def soundnet_encoding_conv_forward(
        emb_nchw, params, *, out_size, power_transform=False,
        small_t_threshold=128, m_tile=512, t_tile=1024, c_tile=1024,
        sqrt_in_low_precision=None, vmem_limit_bytes=48 * 1024 * 1024):
    """Forward of SoundNetEncoding_conv's encoding_fmri head (kernel_size=1).

    emb_nchw: (N, Cin, T, 1) backbone embedding (NCHW), f32 or bf16 (bf16 halves HBM traffic;
              no wrapper-side cast is ever added).
    params:   output of prepare_encoding_params(weight, bias).
    out_size: Cout (static).
    returns:  (N, Cout, T, 1) float32, matching nn.Conv2d(Cin, Cout, (1,1)).
    """
    N, C, T, W = emb_nchw.shape
    assert W == 1, "SoundNet embedding has width 1 (NCHW W axis)"
    assert t_tile % 128 == 0 and c_tile % 8 == 0 and m_tile % 8 == 0
    Cout = int(out_size)
    assert params["w_oc"].shape == (_round_up(Cout, 8), C)
    if sqrt_in_low_precision is None:
        sqrt_in_low_precision = _default_sqrt_in_low_precision()

    if T < small_t_threshold:
        # ---------------- small-T path: Cout on lanes, N*T folded into M ----------------
        w, b = params["w_co"], params["b_row"]
        cout_l = w.shape[1]
        M = N * T
        # One pass over a tiny tensor; buys unmasked stores + full-width MXU in the kernel.
        x2d = jnp.transpose(emb_nchw[..., 0], (0, 2, 1)).reshape(M, C)
        tm = M if M <= m_tile else m_tile            # full-extent block is always legal
        grid = (_cdiv(M, tm),)

        out2d = pl.pallas_call(
            functools.partial(_cout_on_lanes_kernel,
                              power_transform=power_transform,
                              sqrt_in_low_precision=sqrt_in_low_precision),
            out_shape=jax.ShapeDtypeStruct((M, cout_l), jnp.float32),
            grid_spec=pltpu.PrefetchScalarGridSpec(
                num_scalar_prefetch=0,
                grid=grid,
                in_specs=[
                    pl.BlockSpec((tm, C), lambda i: (i, 0)),
                    pl.BlockSpec((C, cout_l), lambda i: (0, 0)),   # weight resident
                    pl.BlockSpec((1, cout_l), lambda i: (0, 0)),   # bias resident
                ],
                out_specs=pl.BlockSpec((tm, cout_l), lambda i: (i, 0)),
            ),
            compiler_params=pltpu.CompilerParams(
                dimension_semantics=("parallel",),
                vmem_limit_bytes=vmem_limit_bytes),
        )(x2d, w, b)

        out = out2d.reshape(N, T, cout_l)[:, :, :Cout]            # strip lane padding only
        return jnp.transpose(out, (0, 2, 1))[..., None]           # (N, Cout, T, 1)

    # ---------------- large-T path: native NCHW, T on lanes ----------------
    w, b = params["w_oc"], params["b_col"]
    cout_s = w.shape[0]
    x = emb_nchw[..., 0]                              # (N, C, T): no pad, no transpose
    tt = T if T <= t_tile else t_tile                 # ragged last T tile handled by Pallas
    tc = cout_s if cout_s <= c_tile else c_tile
    grid = (N, _cdiv(T, tt), _cdiv(cout_s, tc))       # Cout innermost -> x block stays resident

    out = pl.pallas_call(
        functools.partial(_t_on_lanes_kernel,
                          power_transform=power_transform,
                          sqrt_in_low_precision=sqrt_in_low_precision),
        out_shape=jax.ShapeDtypeStruct((N, cout_s, T), jnp.float32),
        grid_spec=pltpu.PrefetchScalarGridSpec(
            num_scalar_prefetch=0,
            grid=grid,
            in_specs=[
                # activation read ONCE per (n, ti): block index constant over the inner Cout
                # sweep, so the pipeline skips the re-DMA.
                pl.BlockSpec((1, C, tt), lambda n, ti, ci: (n, 0, ti)),
                pl.BlockSpec((tc, C), lambda n, ti, ci: (ci, 0)),
                pl.BlockSpec((tc, 1), lambda n, ti, ci: (ci, 0)),
            ],
            out_specs=pl.BlockSpec((1, tc, tt), lambda n, ti, ci: (n, ci, ti)),
        ),
        compiler_params=pltpu.CompilerParams(
            # independent output tiles on every axis -> megacore sharding where grid allows
            dimension_semantics=("parallel", "parallel", "parallel"),
            # <=48 MiB: safe on v7x's 64 MiB VMEM, plenty of headroom on v5e/v6e (128 MiB)
            vmem_limit_bytes=vmem_limit_bytes),
    )(x, w, b)

    if cout_s != Cout:                                # only slice the axis that was padded
        out = out[:, :Cout, :]
    return out[..., None]                             # (N, Cout, T, 1) NCHW


def _reference_forward(emb_nchw, weight, bias, power_transform):
    """Plain-JAX reference of the 1x1-conv encoding head."""
    x = emb_nchw[..., 0].astype(jnp.float32)
    if power_transform:
        x = jnp.sqrt(x)
    y = jnp.einsum("nct,oc->not", x, weight[:, :, 0, 0]) + bias[None, :, None]
    return y[..., None]


if __name__ == "__main__":
    root = jax.random.PRNGKey(0)
    k1, k2 = jax.random.split(root)

    # ---- Test 1: realistic small-T regime (SoundNet conv7: C=1024, T=16, MIST-210 ROIs) ----
    k_emb, k_w, k_b = jax.random.split(k1, 3)
    N, C, T = 2, 1024, 16
    out_size = 210
    emb = jax.random.uniform(k_emb, (N, C, T, 1), jnp.float32)      # post-ReLU -> non-negative
    s = 1.0 / np.sqrt(C)
    weight = jax.random.uniform(k_w, (out_size, C, 1, 1), jnp.float32, -s, s)
    bias = jax.random.uniform(k_b, (out_size,), jnp.float32, -s, s)

    params = prepare_encoding_params(weight, bias)                  # hoisted: module-init time
    fwd = jax.jit(functools.partial(soundnet_encoding_conv_forward,
                                    out_size=out_size, power_transform=True))
    out = jax.block_until_ready(fwd(emb, params))
    ref = jax.block_until_ready(_reference_forward(emb, weight, bias, True))
    assert out.shape == (N, out_size, T, 1), out.shape
    # bf16 MXU inputs with f32 accumulation -> loosened tolerance vs f32 reference.
    np.testing.assert_allclose(np.asarray(out), np.asarray(ref), rtol=2e-2, atol=2e-2)

    # ---- Test 2: large-T path (small shapes) with ragged T tiles and Cout padding ----
    k_emb2, k_w2, k_b2 = jax.random.split(k2, 3)
    N2, C2, T2, out2 = 1, 128, 200, 20
    emb2 = jax.random.uniform(k_emb2, (N2, C2, T2, 1), jnp.float32)
    s2 = 1.0 / np.sqrt(C2)
    weight2 = jax.random.uniform(k_w2, (out2, C2, 1, 1), jnp.float32, -s2, s2)
    bias2 = jax.random.uniform(k_b2, (out2,), jnp.float32, -s2, s2)
    params2 = prepare_encoding_params(weight2, bias2)
    fwd2 = jax.jit(functools.partial(soundnet_encoding_conv_forward,
                                     out_size=out2, power_transform=True,
                                     small_t_threshold=128, t_tile=128))
    out_b = jax.block_until_ready(fwd2(emb2, params2))
    ref_b = jax.block_until_ready(_reference_forward(emb2, weight2, bias2, True))
    assert out_b.shape == (N2, out2, T2, 1), out_b.shape
    np.testing.assert_allclose(np.asarray(out_b), np.asarray(ref_b), rtol=2e-2, atol=2e-2)

    print("KERNEL_OK")
</pallas_src>

<mosaic_0001>
module attributes {stable_mosaic.version = 11 : i64} {
  func.func @_cout_on_lanes_kernel(%arg0: i32, %arg1: memref<32x1024xf32, #tpu.memory_space<vmem>>, %arg2: memref<1024x256xbf16, #tpu.memory_space<vmem>>, %arg3: memref<1x256xf32, #tpu.memory_space<vmem>>, %arg4: memref<32x256xf32, #tpu.memory_space<vmem>>) attributes {dimension_semantics = [#tpu.dimension_semantics<parallel>], iteration_bounds = array<i64: 1>, scalar_prefetch = 0 : i64, scratch_operands = 0 : i64, tpu.core_type = #tpu.core_type<tc>, window_params = [{transform_indices = @transform_0, window_bounds = array<i64: 32, 1024>}, {pipeline_mode = #tpu.pipeline_mode<synchronous>, transform_indices = @transform_1, window_bounds = array<i64: 1024, 256>}, {pipeline_mode = #tpu.pipeline_mode<synchronous>, transform_indices = @transform_2, window_bounds = array<i64: 1, 256>}, {transform_indices = @transform_3, window_bounds = array<i64: 32, 256>}]} {
    %c0 = arith.constant 0 : index
    %c0_0 = arith.constant 0 : index
    %0 = vector.load %arg1[%c0, %c0_0] : memref<32x1024xf32, #tpu.memory_space<vmem>>, vector<32x1024xf32>
    %1 = math.sqrt %0 : vector<32x1024xf32>
    %2 = arith.truncf %1 : vector<32x1024xf32> to vector<32x1024xbf16>
    %c0_1 = arith.constant 0 : index
    %c0_2 = arith.constant 0 : index
    %3 = vector.load %arg2[%c0_1, %c0_2] : memref<1024x256xbf16, #tpu.memory_space<vmem>>, vector<1024x256xbf16>
    %cst = arith.constant dense<0.000000e+00> : vector<32x256xf32>
    %4 = tpu.matmul %2, %3, %cst {dimension_numbers = #tpu.dot_dimension_numbers<[1], [0], [0], [1], [0, 0, 1, 1], [], []>} : vector<32x1024xbf16>, vector<1024x256xbf16>, vector<32x256xf32> -> vector<32x256xf32>
    %c0_3 = arith.constant 0 : index
    %c0_4 = arith.constant 0 : index
    %5 = vector.load %arg3[%c0_3, %c0_4] : memref<1x256xf32, #tpu.memory_space<vmem>>, vector<1x256xf32>
    %6 = vector.broadcast %5 : vector<1x256xf32> to vector<32x256xf32>
    %7 = arith.addf %4, %6 : vector<32x256xf32>
    %c0_5 = arith.constant 0 : index
    %c0_6 = arith.constant 0 : index
    %8 = vector.load %arg4[%c0_5, %c0_6] : memref<32x256xf32, #tpu.memory_space<vmem>>, vector<32x256xf32>
    tpu.vector_store %arg4[%c0_5, %c0_6], %7 {strides = array<i32>} : memref<32x256xf32, #tpu.memory_space<vmem>>, vector<32x256xf32>,
    return
  }
  func.func @transform_0(%arg0: i32) -> (i32, i32) {
    %c0_i32 = arith.constant 0 : i32
    %c0_i32_0 = arith.constant 0 : i32
    return %arg0, %c0_i32 : i32, i32
  }
  func.func @transform_1(%arg0: i32) -> (i32, i32) {
    %c0_i32 = arith.constant 0 : i32
    %c0_i32_0 = arith.constant 0 : i32
    %c0_i32_1 = arith.constant 0 : i32
    return %c0_i32, %c0_i32_0 : i32, i32
  }
  func.func @transform_2(%arg0: i32) -> (i32, i32) {
    %c0_i32 = arith.constant 0 : i32
    %c0_i32_0 = arith.constant 0 : i32
    %c0_i32_1 = arith.constant 0 : i32
    return %c0_i32, %c0_i32_0 : i32, i32
  }
  func.func @transform_3(%arg0: i32) -> (i32, i32) {
    %c0_i32 = arith.constant 0 : i32
    %c0_i32_0 = arith.constant 0 : i32
    return %arg0, %c0_i32 : i32, i32
  }
}

</mosaic_0001>

<llo_original>
// kernel: soundnet_encoding_conv_forward.1
$region0: #{soundnet_encoding_conv_forward.1}
  #allocation0 [shape = 'u32[]', space=smem, size = 0x4, offset = 0x4, fixed_abs, tag = 'smem constant byte address 0x4 - core index']
  #allocation1 [shape = 'u32[144,128]{1,0:T(1,128)}', space=vmem, size = 0x12000, scoped, tag = 'internal scratch']
  %s0 = inlined_call_operand.vmem [shape: f32[32,1024], index: 0, kind: input, shape index: {}]
  %s1 = inlined_call_operand.hbm [shape: bf16[1024,256], index: 1, kind: input, shape index: {}]
  %s2 = inlined_call_operand.vmem [shape: f32[1,256], index: 2, kind: input, shape index: {}]
  %s3 = inlined_call_operand.vmem [shape: f32[32,256], index: 3, kind: output, shape index: {}]
  %s4 = sld [smem:[#allocation0]]
  $region26: #{soundnet_encoding_conv_forward.1} parent=0
    _
  %s6 = ssub.s32 1, %s4
  %s7 = scalar_select 0, %s6, %s4
  $region1: #{soundnet_encoding_conv_forward.1} parent=0
    #allocation2 [shape = 'u8[524288]{0}', space=vmem, size = 0x80000, scoped, tag = 'input window, operand 1, single buffered']
    #allocation3 [shape = 's32[1]{0}', space=sflag, size = 0x4, scoped, tag = 'scoped memory for soundnet_encoding_conv_forward.1']
    %8 = vsyncpa [#allocation3], 0
    // Predicated region
    $region2: #{soundnet_encoding_conv_forward.1} parent=1 // pred_check
      _
    $region3: #{soundnet_encoding_conv_forward.1} parent=1 // pred_check_branch
      %10 = sbr.rel (0) target = $region5
    $region4: #{soundnet_encoding_conv_forward.1} parent=1 // pred_region
      _
    $region5: #{soundnet_encoding_conv_forward.1} parent=1 // pred_fallthru
      _
    // Predicated region
    $region6: #{soundnet_encoding_conv_forward.1} parent=1 // pred_check
      _
    $region7: #{soundnet_encoding_conv_forward.1} parent=1 // pred_check_branch
      %12 = sbr.rel (0) target = $region9
    $region8: #{soundnet_encoding_conv_forward.1} parent=1 // pred_region
      %s14 = ssub.s32 16384, 16384
      %15 = vsyncadd [#allocation3], %s14
      %s16 = sshll.u32 [#allocation2], 4
      %s17 = int_to_ptr.vmem [resolvable:$true] %s16
      %22 = dma.hbm_to_vmem [thread:$0]  %s1, 16384, %s17, [#allocation3], 128, 128, 8
    $region9: #{soundnet_encoding_conv_forward.1} parent=1 // pred_fallthru
      _
    // Predicated region
    $region10: #{soundnet_encoding_conv_forward.1} parent=1 // pred_check
      _
    $region11: #{soundnet_encoding_conv_forward.1} parent=1 // pred_check_branch
      %24 = sbr.rel (0) target = $region13
    $region12: #{soundnet_encoding_conv_forward.1} parent=1 // pred_region
      _
    $region13: #{soundnet_encoding_conv_forward.1} parent=1 // pred_fallthru
      _
    // Predicated region
    $region14: #{soundnet_encoding_conv_forward.1} parent=1 // pred_check
      _
    $region15: #{soundnet_encoding_conv_forward.1} parent=1 // pred_check_branch
      %26 = sbr.rel (0) target = $region17
    $region16: #{soundnet_encoding_conv_forward.1} parent=1 // pred_region
      %27 = dma.done [#allocation3], 16384
    $region17: #{soundnet_encoding_conv_forward.1} parent=1 // pred_fallthru
      _
    %v28 = vld [vmem:[%s0] sm:$0xff]
    %v29 = vld [vmem:[%s0 + $0x8] sm:$0xff]
    %v30 = vld [vmem:[%s0 + $0x10] sm:$0xff]
    %v31 = vld [vmem:[%s0 + $0x18] sm:$0xff]
    %v32 = vld [vmem:[%s0 + $0x20] sm:$0xff]
    %v33 = vld [vmem:[%s0 + $0x28] sm:$0xff]
    %v34 = vld [vmem:[%s0 + $0x30] sm:$0xff]
    %v35 = vld [vmem:[%s0 + $0x38] sm:$0xff]
    %v36 = vld [vmem:[%s0 + $0x40] sm:$0xff]
    %v37 = vld [vmem:[%s0 + $0x48] sm:$0xff]
    %v38 = vld [vmem:[%s0 + $0x50] sm:$0xff]
    %v39 = vld [vmem:[%s0 + $0x58] sm:$0xff]
    %v40 = vld [vmem:[%s0 + $0x60] sm:$0xff]
    %v41 = vld [vmem:[%s0 + $0x68] sm:$0xff]
    %v42 = vld [vmem:[%s0 + $0x70] sm:$0xff]
    %v43 = vld [vmem:[%s0 + $0x78] sm:$0xff]
    %v44 = vld [vmem:[%s0 + $0x80] sm:$0xff]
    %v45 = vld [vmem:[%s0 + $0x88] sm:$0xff]
    %v46 = vld [vmem:[%s0 + $0x90] sm:$0xff]
    %v47 = vld [vmem:[%s0 + $0x98] sm:$0xff]
    %v48 = vld [vmem:[%s0 + $0xa0] sm:$0xff]
    %v49 = vld [vmem:[%s0 + $0xa8] sm:$0xff]
    %v50 = vld [vmem:[%s0 + $0xb0] sm:$0xff]
    %v51 = vld [vmem:[%s0 + $0xb8] sm:$0xff]
    %v52 = vld [vmem:[%s0 + $0xc0] sm:$0xff]
    %v53 = vld [vmem:[%s0 + $0xc8] sm:$0xff]
    %v54 = vld [vmem:[%s0 + $0xd0] sm:$0xff]
    %v55 = vld [vmem:[%s0 + $0xd8] sm:$0xff]
    %v56 = vld [vmem:[%s0 + $0xe0] sm:$0xff]
    %v57 = vld [vmem:[%s0 + $0xe8] sm:$0xff]
    %v58 = vld [vmem:[%s0 + $0xf0] sm:$0xff]
    %v59 = vld [vmem:[%s0 + $0xf8] sm:$0xff]
    %v60 = vrsqrt.pop %v28
    %v61 = vmul.f32 %v28, %v60
    %vm62 = vcmp.eq.f32.partialorder %v28, inf
    %v63 = vsel %vm62, %v28, %v61
    %vm64 = vcmp.eq.f32.partialorder %v28, 0.0
    %v65 = vand.u32 %v28, 2147483648
    %v66 = vsel %vm64, %v65, %v63
    %v67 = vrsqrt.pop %v29
    %v68 = vmul.f32 %v29, %v67
    %vm69 = vcmp.eq.f32.partialorder %v29, inf
    %v70 = vsel %vm69, %v29, %v68
    %vm71 = vcmp.eq.f32.partialorder %v29, 0.0
    %v72 = vand.u32 %v29, 2147483648
    %v73 = vsel %vm71, %v72, %v70
    %v74 = vrsqrt.pop %v30
    %v75 = vmul.f32 %v30, %v74
    %vm76 = vcmp.eq.f32.partialorder %v30, inf
    %v77 = vsel %vm76, %v30, %v75
    %vm78 = vcmp.eq.f32.partialorder %v30, 0.0
    %v79 = vand.u32 %v30, 2147483648
    %v80 = vsel %vm78, %v79, %v77
    %v81 = vrsqrt.pop %v31
    %v82 = vmul.f32 %v31, %v81
    %vm83 = vcmp.eq.f32.partialorder %v31, inf
    %v84 = vsel %vm83, %v31, %v82
    %vm85 = vcmp.eq.f32.partialorder %v31, 0.0
    %v86 = vand.u32 %v31, 2147483648
    %v87 = vsel %vm85, %v86, %v84
    %v88 = vrsqrt.pop %v32
    %v89 = vmul.f32 %v32, %v88
    %vm90 = vcmp.eq.f32.partialorder %v32, inf
    %v91 = vsel %vm90, %v32, %v89
    %vm92 = vcmp.eq.f32.partialorder %v32, 0.0
    %v93 = vand.u32 %v32, 2147483648
    %v94 = vsel %vm92, %v93, %v91
    %v95 = vrsqrt.pop %v33
    %v96 = vmul.f32 %v33, %v95
    %vm97 = vcmp.eq.f32.partialorder %v33, inf
    %v98 = vsel %vm97, %v33, %v96
    %vm99 = vcmp.eq.f32.partialorder %v33, 0.0
    %v100 = vand.u32 %v33, 2147483648
    %v101 = vsel %vm99, %v100, %v98
    %v102 = vrsqrt.pop %v34
    %v103 = vmul.f32 %v34, %v102
    %vm104 = vcmp.eq.f32.partialorder %v34, inf
    %v105 = vsel %vm104, %v34, %v103
    %vm106 = vcmp.eq.f32.partialorder %v34, 0.0
    %v107 = vand.u32 %v34, 2147483648
    %v108 = vsel %vm106, %v107, %v105
    %v109 = vrsqrt.pop %v35
    %v110 = vmul.f32 %v35, %v109
    %vm111 = vcmp.eq.f32.partialorder %v35, inf
    %v112 = vsel %vm111, %v35, %v110
    %vm113 = vcmp.eq.f32.partialorder %v35, 0.0
    %v114 = vand.u32 %v35, 2147483648
    %v115 = vsel %vm113, %v114, %v112
    %v116 = vrsqrt.pop %v36
    %v117 = vmul.f32 %v36, %v116
    %vm118 = vcmp.eq.f32.partialorder %v36, inf
    %v119 = vsel %vm118, %v36, %v117
    %vm120 = vcmp.eq.f32.partialorder %v36, 0.0
    %v121 = vand.u32 %v36, 2147483648
    %v122 = vsel %vm120, %v121, %v119
    %v123 = vrsqrt.pop %v37
    %v124 = vmul.f32 %v37, %v123
    %vm125 = vcmp.eq.f32.partialorder %v37, inf
    %v126 = vsel %vm125, %v37, %v124
    %vm127 = vcmp.eq.f32.partialorder %v37, 0.0
    %v128 = vand.u32 %v37, 2147483648
    %v129 = vsel %vm127, %v128, %v126
    %v130 = vrsqrt.pop %v38
    %v131 = vmul.f32 %v38, %v130
    %vm132 = vcmp.eq.f32.partialorder %v38, inf
    %v133 = vsel %vm132, %v38, %v131
    %vm134 = vcmp.eq.f32.partialorder %v38, 0.0
    %v135 = vand.u32 %v38, 2147483648
    %v136 = vsel %vm134, %v135, %v133
    %v137 = vrsqrt.pop %v39
    %v138 = vmul.f32 %v39, %v137
    %vm139 = vcmp.eq.f32.partialorder %v39, inf
    %v140 = vsel %vm139, %v39, %v138
    %vm141 = vcmp.eq.f32.partialorder %v39, 0.0
    %v142 = vand.u32 %v39, 2147483648
    %v143 = vsel %vm141, %v142, %v140
    %v144 = vrsqrt.pop %v40
    %v145 = vmul.f32 %v40, %v144
    %vm146 = vcmp.eq.f32.partialorder %v40, inf
    %v147 = vsel %vm146, %v40, %v145
    %vm148 = vcmp.eq.f32.partialorder %v40, 0.0
    %v149 = vand.u32 %v40, 2147483648
    %v150 = vsel %vm148, %v149, %v147
    %v151 = vrsqrt.pop %v41
    %v152 = vmul.f32 %v41, %v151
    %vm153 = vcmp.eq.f32.partialorder %v41, inf
    %v154 = vsel %vm153, %v41, %v152
    %vm155 = vcmp.eq.f32.partialorder %v41, 0.0
    %v156 = vand.u32 %v41, 2147483648
    %v157 = vsel %vm155, %v156, %v154
    %v158 = vrsqrt.pop %v42
    %v159 = vmul.f32 %v42, %v158
    %vm160 = vcmp.eq.f32.partialorder %v42, inf
    %v161 = vsel %vm160, %v42, %v159
    %vm162 = vcmp.eq.f32.partialorder %v42, 0.0
    %v163 = vand.u32 %v42, 2147483648
    %v164 = vsel %vm162, %v163, %v161
    %v165 = vrsqrt.pop %v43
    %v166 = vmul.f32 %v43, %v165
    %vm167 = vcmp.eq.f32.partialorder %v43, inf
    %v168 = vsel %vm167, %v43, %v166
    %vm169 = vcmp.eq.f32.partialorder %v43, 0.0
    %v170 = vand.u32 %v43, 2147483648
    %v171 = vsel %vm169, %v170, %v168
    %v172 = vrsqrt.pop %v44
    %v173 = vmul.f32 %v44, %v172
    %vm174 = vcmp.eq.f32.partialorder %v44, inf
    %v175 = vsel %vm174, %v44, %v173
    %vm176 = vcmp.eq.f32.partialorder %v44, 0.0
    %v177 = vand.u32 %v44, 2147483648
    %v178 = vsel %vm176, %v177, %v175
    %v179 = vrsqrt.pop %v45
    %v180 = vmul.f32 %v45, %v179
    %vm181 = vcmp.eq.f32.partialorder %v45, inf
    %v182 = vsel %vm181, %v45, %v180
    %vm183 = vcmp.eq.f32.partialorder %v45, 0.0
    %v184 = vand.u32 %v45, 2147483648
    %v185 = vsel %vm183, %v184, %v182
    %v186 = vrsqrt.pop %v46
    %v187 = vmul.f32 %v46, %v186
    %vm188 = vcmp.eq.f32.partialorder %v46, inf
    %v189 = vsel %vm188, %v46, %v187
    %vm190 = vcmp.eq.f32.partialorder %v46, 0.0
    %v191 = vand.u32 %v46, 2147483648
    %v192 = vsel %vm190, %v191, %v189
    %v193 = vrsqrt.pop %v47
    %v194 = vmul.f32 %v47, %v193
    %vm195 = vcmp.eq.f32.partialorder %v47, inf
    %v196 = vsel %vm195, %v47, %v194
    %vm197 = vcmp.eq.f32.partialorder %v47, 0.0
    %v198 = vand.u32 %v47, 2147483648
    %v199 = vsel %vm197, %v198, %v196
    %v200 = vrsqrt.pop %v48
    %v201 = vmul.f32 %v48, %v200
    %vm202 = vcmp.eq.f32.partialorder %v48, inf
    %v203 = vsel %vm202, %v48, %v201
    %vm204 = vcmp.eq.f32.partialorder %v48, 0.0
    %v205 = vand.u32 %v48, 2147483648
    %v206 = vsel %vm204, %v205, %v203
    %v207 = vrsqrt.pop %v49
    %v208 = vmul.f32 %v49, %v207
    %vm209 = vcmp.eq.f32.partialorder %v49, inf
    %v210 = vsel %vm209, %v49, %v208
    %vm211 = vcmp.eq.f32.partialorder %v49, 0.0
    %v212 = vand.u32 %v49, 2147483648
    %v213 = vsel %vm211, %v212, %v210
    %v214 = vrsqrt.pop %v50
    %v215 = vmul.f32 %v50, %v214
    %vm216 = vcmp.eq.f32.partialorder %v50, inf
    %v217 = vsel %vm216, %v50, %v215
    %vm218 = vcmp.eq.f32.partialorder %v50, 0.0
    %v219 = vand.u32 %v50, 2147483648
    %v220 = vsel %vm218, %v219, %v217
    %v221 = vrsqrt.pop %v51
    %v222 = vmul.f32 %v51, %v221
    %vm223 = vcmp.eq.f32.partialorder %v51, inf
    %v224 = vsel %vm223, %v51, %v222
    %vm225 = vcmp.eq.f32.partialorder %v51, 0.0
    %v226 = vand.u32 %v51, 2147483648
    %v227 = vsel %vm225, %v226, %v224
    %v228 = vrsqrt.pop %v52
    %v229 = vmul.f32 %v52, %v228
    %vm230 = vcmp.eq.f32.partialorder %v52, inf
    %v231 = vsel %vm230, %v52, %v229
    %vm232 = vcmp.eq.f32.partialorder %v52, 0.0
    %v233 = vand.u32 %v52, 2147483648
    %v234 = vsel %vm232, %v233, %v231
    %v235 = vrsqrt.pop %v53
    %v236 = vmul.f32 %v53, %v235
    %vm237 = vcmp.eq.f32.partialorder %v53, inf
    %v238 = vsel %vm237, %v53, %v236
    %vm239 = vcmp.eq.f32.partialorder %v53, 0.0
    %v240 = vand.u32 %v53, 2147483648
    %v241 = vsel %vm239, %v240, %v238
    %v242 = vrsqrt.pop %v54
    %v243 = vmul.f32 %v54, %v242
    %vm244 = vcmp.eq.f32.partialorder %v54, inf
    %v245 = vsel %vm244, %v54, %v243
    %vm246 = vcmp.eq.f32.partialorder %v54, 0.0
    %v247 = vand.u32 %v54, 2147483648
    %v248 = vsel %vm246, %v247, %v245
    %v249 = vrsqrt.pop %v55
    %v250 = vmul.f32 %v55, %v249
    %vm251 = vcmp.eq.f32.partialorder %v55, inf
    %v252 = vsel %vm251, %v55, %v250
    %vm253 = vcmp.eq.f32.partialorder %v55, 0.0
    %v254 = vand.u32 %v55, 2147483648
    %v255 = vsel %vm253, %v254, %v252
    %v256 = vrsqrt.pop %v56
    %v257 = vmul.f32 %v56, %v256
    %vm258 = vcmp.eq.f32.partialorder %v56, inf
    %v259 = vsel %vm258, %v56, %v257
    %vm260 = vcmp.eq.f32.partialorder %v56, 0.0
    %v261 = vand.u32 %v56, 2147483648
    %v262 = vsel %vm260, %v261, %v259
    %v263 = vrsqrt.pop %v57
    %v264 = vmul.f32 %v57, %v263
    %vm265 = vcmp.eq.f32.partialorder %v57, inf
    %v266 = vsel %vm265, %v57, %v264
    %vm267 = vcmp.eq.f32.partialorder %v57, 0.0
    %v268 = vand.u32 %v57, 2147483648
    %v269 = vsel %vm267, %v268, %v266
    %v270 = vrsqrt.pop %v58
    %v271 = vmul.f32 %v58, %v270
    %vm272 = vcmp.eq.f32.partialorder %v58, inf
    %v273 = vsel %vm272, %v58, %v271
    %vm274 = vcmp.eq.f32.partialorder %v58, 0.0
    %v275 = vand.u32 %v58, 2147483648
    %v276 = vsel %vm274, %v275, %v273
    %v277 = vrsqrt.pop %v59
    %v278 = vmul.f32 %v59, %v277
    %vm279 = vcmp.eq.f32.partialorder %v59, inf
    %v280 = vsel %vm279, %v59, %v278
    %vm281 = vcmp.eq.f32.partialorder %v59, 0.0
    %v282 = vand.u32 %v59, 2147483648
    %v283 = vsel %vm281, %v282, %v280
    %v284 = vpack.c.bf16 %v122, %v66
    %v285 = vpack.c.bf16 %v129, %v73
    %v286 = vpack.c.bf16 %v136, %v80
    %v287 = vpack.c.bf16 %v143, %v87
    %v288 = vpack.c.bf16 %v150, %v94
    %v289 = vpack.c.bf16 %v157, %v101
    %v290 = vpack.c.bf16 %v164, %v108
    %v291 = vpack.c.bf16 %v171, %v115
    %v292 = vpack.c.bf16 %v234, %v178
    %v293 = vpack.c.bf16 %v241, %v185
    %v294 = vpack.c.bf16 %v248, %v192
    %v295 = vpack.c.bf16 %v255, %v199
    %v296 = vpack.c.bf16 %v262, %v206
    %v297 = vpack.c.bf16 %v269, %v213
    %v298 = vpack.c.bf16 %v276, %v220
    %v299 = vpack.c.bf16 %v283, %v227
    %v300 = vld [vmem:[#allocation2] sm:$0xff]
    %v301 = vld [vmem:[#allocation2 + $0x8] sm:$0xff]
    %v302 = vld [vmem:[#allocation2 + $0x10] sm:$0xff]
    %v303 = vld [vmem:[#allocation2 + $0x18] sm:$0xff]
    %v304 = vld [vmem:[#allocation2 + $0x20] sm:$0xff]
    %v305 = vld [vmem:[#allocation2 + $0x28] sm:$0xff]
    %v306 = vld [vmem:[#allocation2 + $0x30] sm:$0xff]
    %v307 = vld [vmem:[#allocation2 + $0x38] sm:$0xff]
    %v308 = vld [vmem:[#allocation2 + $0x40] sm:$0xff]
    %v309 = vld [vmem:[#allocation2 + $0x48] sm:$0xff]
    %v310 = vld [vmem:[#allocation2 + $0x50] sm:$0xff]
    %v311 = vld [vmem:[#allocation2 + $0x58] sm:$0xff]
    %v312 = vld [vmem:[#allocation2 + $0x60] sm:$0xff]
    %v313 = vld [vmem:[#allocation2 + $0x68] sm:$0xff]
    %v314 = vld [vmem:[#allocation2 + $0x70] sm:$0xff]
    %v315 = vld [vmem:[#allocation2 + $0x78] sm:$0xff]
    %v316 = vld [vmem:[#allocation2 + $0x80] sm:$0xff]
    %v317 = vld [vmem:[#allocation2 + $0x88] sm:$0xff]
    %v318 = vld [vmem:[#allocation2 + $0x90] sm:$0xff]
    %v319 = vld [vmem:[#allocation2 + $0x98] sm:$0xff]
    %v320 = vld [vmem:[#allocation2 + $0xa0] sm:$0xff]
    %v321 = vld [vmem:[#allocation2 + $0xa8] sm:$0xff]
    %v322 = vld [vmem:[#allocation2 + $0xb0] sm:$0xff]
    %v323 = vld [vmem:[#allocation2 + $0xb8] sm:$0xff]
    %v324 = vld [vmem:[#allocation2 + $0xc0] sm:$0xff]
    %v325 = vld [vmem:[#allocation2 + $0xc8] sm:$0xff]
    %v326 = vld [vmem:[#allocation2 + $0xd0] sm:$0xff]
    %v327 = vld [vmem:[#allocation2 + $0xd8] sm:$0xff]
    %v328 = vld [vmem:[#allocation2 + $0xe0] sm:$0xff]
    %v329 = vld [vmem:[#allocation2 + $0xe8] sm:$0xff]
    %v330 = vld [vmem:[#allocation2 + $0xf0] sm:$0xff]
    %v331 = vld [vmem:[#allocation2 + $0xf8] sm:$0xff]
    %v332 = vld [vmem:[#allocation2 + $0x100] sm:$0xff]
    %v333 = vld [vmem:[#allocation2 + $0x108] sm:$0xff]
    %v334 = vld [vmem:[#allocation2 + $0x110] sm:$0xff]
    %v335 = vld [vmem:[#allocation2 + $0x118] sm:$0xff]
    %v336 = vld [vmem:[#allocation2 + $0x120] sm:$0xff]
    %v337 = vld [vmem:[#allocation2 + $0x128] sm:$0xff]
    %v338 = vld [vmem:[#allocation2 + $0x130] sm:$0xff]
    %v339 = vld [vmem:[#allocation2 + $0x138] sm:$0xff]
    %v340 = vld [vmem:[#allocation2 + $0x140] sm:$0xff]
    %v341 = vld [vmem:[#allocation2 + $0x148] sm:$0xff]
    %v342 = vld [vmem:[#allocation2 + $0x150] sm:$0xff]
    %v343 = vld [vmem:[#allocation2 + $0x158] sm:$0xff]
    %v344 = vld [vmem:[#allocation2 + $0x160] sm:$0xff]
    %v345 = vld [vmem:[#allocation2 + $0x168] sm:$0xff]
    %v346 = vld [vmem:[#allocation2 + $0x170] sm:$0xff]
    %v347 = vld [vmem:[#allocation2 + $0x178] sm:$0xff]
    %v348 = vld [vmem:[#allocation2 + $0x180] sm:$0xff]
    %v349 = vld [vmem:[#allocation2 + $0x188] sm:$0xff]
    %v350 = vld [vmem:[#allocation2 + $0x190] sm:$0xff]
    %v351 = vld [vmem:[#allocation2 + $0x198] sm:$0xff]
    %v352 = vld [vmem:[#allocation2 + $0x1a0] sm:$0xff]
    %v353 = vld [vmem:[#allocation2 + $0x1a8] sm:$0xff]
    %v354 = vld [vmem:[#allocation2 + $0x1b0] sm:$0xff]
    %v355 = vld [vmem:[#allocation2 + $0x1b8] sm:$0xff]
    %v356 = vld [vmem:[#allocation2 + $0x1c0] sm:$0xff]
    %v357 = vld [vmem:[#allocation2 + $0x1c8] sm:$0xff]
    %v358 = vld [vmem:[#allocation2 + $0x1d0] sm:$0xff]
    %v359 = vld [vmem:[#allocation2 + $0x1d8] sm:$0xff]
    %v360 = vld [vmem:[#allocation2 + $0x1e0] sm:$0xff]
    %v361 = vld [vmem:[#allocation2 + $0x1e8] sm:$0xff]
    %v362 = vld [vmem:[#allocation2 + $0x1f0] sm:$0xff]
    %v363 = vld [vmem:[#allocation2 + $0x1f8] sm:$0xff]
    %v364 = vld [vmem:[#allocation2 + $0x200] sm:$0xff]
    %v365 = vld [vmem:[#allocation2 + $0x208] sm:$0xff]
    %v366 = vld [vmem:[#allocation2 + $0x210] sm:$0xff]
    %v367 = vld [vmem:[#allocation2 + $0x218] sm:$0xff]
    %v368 = vld [vmem:[#allocation2 + $0x220] sm:$0xff]
    %v369 = vld [vmem:[#allocation2 + $0x228] sm:$0xff]
    %v370 = vld [vmem:[#allocation2 + $0x230] sm:$0xff]
    %v371 = vld [vmem:[#allocation2 + $0x238] sm:$0xff]
    %v372 = vld [vmem:[#allocation2 + $0x240] sm:$0xff]
    %v373 = vld [vmem:[#allocation2 + $0x248] sm:$0xff]
    %v374 = vld [vmem:[#allocation2 + $0x250] sm:$0xff]
    %v375 = vld [vmem:[#allocation2 + $0x258] sm:$0xff]
    %v376 = vld [vmem:[#allocation2 + $0x260] sm:$0xff]
    %v377 = vld [vmem:[#allocation2 + $0x268] sm:$0xff]
    %v378 = vld [vmem:[#allocation2 + $0x270] sm:$0xff]
    %v379 = vld [vmem:[#allocation2 + $0x278] sm:$0xff]
    %v380 = vld [vmem:[#allocation2 + $0x280] sm:$0xff]
    %v381 = vld [vmem:[#allocation2 + $0x288] sm:$0xff]
    %v382 = vld [vmem:[#allocation2 + $0x290] sm:$0xff]
    %v383 = vld [vmem:[#allocation2 + $0x298] sm:$0xff]
    %v384 = vld [vmem:[#allocation2 + $0x2a0] sm:$0xff]
    %v385 = vld [vmem:[#allocation2 + $0x2a8] sm:$0xff]
    %v386 = vld [vmem:[#allocation2 + $0x2b0] sm:$0xff]
    %v387 = vld [vmem:[#allocation2 + $0x2b8] sm:$0xff]
    %v388 = vld [vmem:[#allocation2 + $0x2c0] sm:$0xff]
    %v389 = vld [vmem:[#allocation2 + $0x2c8] sm:$0xff]
    %v390 = vld [vmem:[#allocation2 + $0x2d0] sm:$0xff]
    %v391 = vld [vmem:[#allocation2 + $0x2d8] sm:$0xff]
    %v392 = vld [vmem:[#allocation2 + $0x2e0] sm:$0xff]
    %v393 = vld [vmem:[#allocation2 + $0x2e8] sm:$0xff]
    %v394 = vld [vmem:[#allocation2 + $0x2f0] sm:$0xff]
    %v395 = vld [vmem:[#allocation2 + $0x2f8] sm:$0xff]
    %v396 = vld [vmem:[#allocation2 + $0x300] sm:$0xff]
    %v397 = vld [vmem:[#allocation2 + $0x308] sm:$0xff]
    %v398 = vld [vmem:[#allocation2 + $0x310] sm:$0xff]
    %v399 = vld [vmem:[#allocation2 + $0x318] sm:$0xff]
    %v400 = vld [vmem:[#allocation2 + $0x320] sm:$0xff]
    %v401 = vld [vmem:[#allocation2 + $0x328] sm:$0xff]
    %v402 = vld [vmem:[#allocation2 + $0x330] sm:$0xff]
    %v403 = vld [vmem:[#allocation2 + $0x338] sm:$0xff]
    %v404 = vld [vmem:[#allocation2 + $0x340] sm:$0xff]
    %v405 = vld [vmem:[#allocation2 + $0x348] sm:$0xff]
    %v406 = vld [vmem:[#allocation2 + $0x350] sm:$0xff]
    %v407 = vld [vmem:[#allocation2 + $0x358] sm:$0xff]
    %v408 = vld [vmem:[#allocation2 + $0x360] sm:$0xff]
    %v409 = vld [vmem:[#allocation2 + $0x368] sm:$0xff]
    %v410 = vld [vmem:[#allocation2 + $0x370] sm:$0xff]
    %v411 = vld [vmem:[#allocation2 + $0x378] sm:$0xff]
    %v412 = vld [vmem:[#allocation2 + $0x380] sm:$0xff]
    %v413 = vld [vmem:[#allocation2 + $0x388] sm:$0xff]
    %v414 = vld [vmem:[#allocation2 + $0x390] sm:$0xff]
    %v415 = vld [vmem:[#allocation2 + $0x398] sm:$0xff]
    %v416 = vld [vmem:[#allocation2 + $0x3a0] sm:$0xff]
    %v417 = vld [vmem:[#allocation2 + $0x3a8] sm:$0xff]
    %v418 = vld [vmem:[#allocation2 + $0x3b0] sm:$0xff]
    %v419 = vld [vmem:[#allocation2 + $0x3b8] sm:$0xff]
    %v420 = vld [vmem:[#allocation2 + $0x3c0] sm:$0xff]
    %v421 = vld [vmem:[#allocation2 + $0x3c8] sm:$0xff]
    %v422 = vld [vmem:[#allocation2 + $0x3d0] sm:$0xff]
    %v423 = vld [vmem:[#allocation2 + $0x3d8] sm:$0xff]
    %v424 = vld [vmem:[#allocation2 + $0x3e0] sm:$0xff]
    %v425 = vld [vmem:[#allocation2 + $0x3e8] sm:$0xff]
    %v426 = vld [vmem:[#allocation2 + $0x3f0] sm:$0xff]
    %v427 = vld [vmem:[#allocation2 + $0x3f8] sm:$0xff]
    %v428 = vld [vmem:[%s2] sm:$0x3]
    %v430 = vlaneseq
    %v431 = vshrl.u32 %v430, 7
    %v432 = vsub.s32 0, %v431
    %v433 = vrot.slane %v428, %v432
    %v434 = vlaneseq
    %v435 = vshrl.u32 %v434, 7
    %v436 = vsub.s32 1, %v435
    %v437 = vrot.slane %v428, %v436
    %v568 = vunpack.c.l.b16 %v300
    %v569 = vunpack.c.h.b16 %v300
    %v570 = vunpack.c.l.b16 %v301
    %v571 = vunpack.c.h.b16 %v301
    %v572 = vunpack.c.l.b16 %v302
    %v573 = vunpack.c.h.b16 %v302
    %v574 = vunpack.c.l.b16 %v303
    %v575 = vunpack.c.h.b16 %v303
    %v576 = vunpack.c.l.b16 %v304
    %v577 = vunpack.c.h.b16 %v304
    %v578 = vunpack.c.l.b16 %v305
    %v579 = vunpack.c.h.b16 %v305
    %v580 = vunpack.c.l.b16 %v306
    %v581 = vunpack.c.h.b16 %v306
    %v582 = vunpack.c.l.b16 %v307
    %v583 = vunpack.c.h.b16 %v307
    %v584 = vunpack.c.l.b16 %v308
    %v585 = vunpack.c.h.b16 %v308
    %v586 = vunpack.c.l.b16 %v309
    %v587 = vunpack.c.h.b16 %v309
    %v588 = vunpack.c.l.b16 %v310
    %v589 = vunpack.c.h.b16 %v310
    %v590 = vunpack.c.l.b16 %v311
    %v591 = vunpack.c.h.b16 %v311
    %v592 = vunpack.c.l.b16 %v312
    %v593 = vunpack.c.h.b16 %v312
    %v594 = vunpack.c.l.b16 %v313
    %v595 = vunpack.c.h.b16 %v313
    %v596 = vunpack.c.l.b16 %v314
    %v597 = vunpack.c.h.b16 %v314
    %v598 = vunpack.c.l.b16 %v315
    %v599 = vunpack.c.h.b16 %v315
    %v600 = vunpack.c.l.b16 %v316
    %v601 = vunpack.c.h.b16 %v316
    %v602 = vunpack.c.l.b16 %v317
    %v603 = vunpack.c.h.b16 %v317
    %v604 = vunpack.c.l.b16 %v318
    %v605 = vunpack.c.h.b16 %v318
    %v606 = vunpack.c.l.b16 %v319
    %v607 = vunpack.c.h.b16 %v319
    %v608 = vunpack.c.l.b16 %v320
    %v609 = vunpack.c.h.b16 %v320
    %v610 = vunpack.c.l.b16 %v321
    %v611 = vunpack.c.h.b16 %v321
    %v612 = vunpack.c.l.b16 %v322
    %v613 = vunpack.c.h.b16 %v322
    %v614 = vunpack.c.l.b16 %v323
    %v615 = vunpack.c.h.b16 %v323
    %v616 = vunpack.c.l.b16 %v324
    %v617 = vunpack.c.h.b16 %v324
    %v618 = vunpack.c.l.b16 %v325
    %v619 = vunpack.c.h.b16 %v325
    %v620 = vunpack.c.l.b16 %v326
    %v621 = vunpack.c.h.b16 %v326
    %v622 = vunpack.c.l.b16 %v327
    %v623 = vunpack.c.h.b16 %v327
    %v624 = vunpack.c.l.b16 %v328
    %v625 = vunpack.c.h.b16 %v328
    %v626 = vunpack.c.l.b16 %v329
    %v627 = vunpack.c.h.b16 %v329
    %v628 = vunpack.c.l.b16 %v330
    %v629 = vunpack.c.h.b16 %v330
    %v630 = vunpack.c.l.b16 %v331
    %v631 = vunpack.c.h.b16 %v331
    %v632 = vunpack.c.l.b16 %v332
    %v633 = vunpack.c.h.b16 %v332
    %v634 = vunpack.c.l.b16 %v333
    %v635 = vunpack.c.h.b16 %v333
    %v636 = vunpack.c.l.b16 %v334
    %v637 = vunpack.c.h.b16 %v334
    %v638 = vunpack.c.l.b16 %v335
    %v639 = vunpack.c.h.b16 %v335
    %v640 = vunpack.c.l.b16 %v336
    %v641 = vunpack.c.h.b16 %v336
    %v642 = vunpack.c.l.b16 %v337
    %v643 = vunpack.c.h.b16 %v337
    %v644 = vunpack.c.l.b16 %v338
    %v645 = vunpack.c.h.b16 %v338
    %v646 = vunpack.c.l.b16 %v339
    %v647 = vunpack.c.h.b16 %v339
    %v648 = vunpack.c.l.b16 %v340
    %v649 = vunpack.c.h.b16 %v340
    %v650 = vunpack.c.l.b16 %v341
    %v651 = vunpack.c.h.b16 %v341
    %v652 = vunpack.c.l.b16 %v342
    %v653 = vunpack.c.h.b16 %v342
    %v654 = vunpack.c.l.b16 %v343
    %v655 = vunpack.c.h.b16 %v343
    %v656 = vunpack.c.l.b16 %v344
    %v657 = vunpack.c.h.b16 %v344
    %v658 = vunpack.c.l.b16 %v345
    %v659 = vunpack.c.h.b16 %v345
    %v660 = vunpack.c.l.b16 %v346
    %v661 = vunpack.c.h.b16 %v346
    %v662 = vunpack.c.l.b16 %v347
    %v663 = vunpack.c.h.b16 %v347
    %v664 = vunpack.c.l.b16 %v348
    %v665 = vunpack.c.h.b16 %v348
    %v666 = vunpack.c.l.b16 %v349
    %v667 = vunpack.c.h.b16 %v349
    %v668 = vunpack.c.l.b16 %v350
    %v669 = vunpack.c.h.b16 %v350
    %v670 = vunpack.c.l.b16 %v351
    %v671 = vunpack.c.h.b16 %v351
    %v672 = vunpack.c.l.b16 %v352
    %v673 = vunpack.c.h.b16 %v352
    %v674 = vunpack.c.l.b16 %v353
    %v675 = vunpack.c.h.b16 %v353
    %v676 = vunpack.c.l.b16 %v354
    %v677 = vunpack.c.h.b16 %v354
    %v678 = vunpack.c.l.b16 %v355
    %v679 = vunpack.c.h.b16 %v355
    %v680 = vunpack.c.l.b16 %v356
    %v681 = vunpack.c.h.b16 %v356
    %v682 = vunpack.c.l.b16 %v357
    %v683 = vunpack.c.h.b16 %v357
    %v684 = vunpack.c.l.b16 %v358
    %v685 = vunpack.c.h.b16 %v358
    %v686 = vunpack.c.l.b16 %v359
    %v687 = vunpack.c.h.b16 %v359
    %v688 = vunpack.c.l.b16 %v360
    %v689 = vunpack.c.h.b16 %v360
    %v690 = vunpack.c.l.b16 %v361
    %v691 = vunpack.c.h.b16 %v361
    %v692 = vunpack.c.l.b16 %v362
    %v693 = vunpack.c.h.b16 %v362
    %v694 = vunpack.c.l.b16 %v363
    %v695 = vunpack.c.h.b16 %v363
    %v696 = vunpack.c.l.b16 %v364
    %v697 = vunpack.c.h.b16 %v364
    %v698 = vunpack.c.l.b16 %v365
    %v699 = vunpack.c.h.b16 %v365
    %v700 = vunpack.c.l.b16 %v366
    %v701 = vunpack.c.h.b16 %v366
    %v702 = vunpack.c.l.b16 %v367
    %v703 = vunpack.c.h.b16 %v367
    %v704 = vunpack.c.l.b16 %v368
    %v705 = vunpack.c.h.b16 %v368
    %v706 = vunpack.c.l.b16 %v369
    %v707 = vunpack.c.h.b16 %v369
    %v708 = vunpack.c.l.b16 %v370
    %v709 = vunpack.c.h.b16 %v370
    %v710 = vunpack.c.l.b16 %v371
    %v711 = vunpack.c.h.b16 %v371
    %v712 = vunpack.c.l.b16 %v372
    %v713 = vunpack.c.h.b16 %v372
    %v714 = vunpack.c.l.b16 %v373
    %v715 = vunpack.c.h.b16 %v373
    %v716 = vunpack.c.l.b16 %v374
    %v717 = vunpack.c.h.b16 %v374
    %v718 = vunpack.c.l.b16 %v375
    %v719 = vunpack.c.h.b16 %v375
    %v720 = vunpack.c.l.b16 %v376
    %v721 = vunpack.c.h.b16 %v376
    %v722 = vunpack.c.l.b16 %v377
    %v723 = vunpack.c.h.b16 %v377
    %v724 = vunpack.c.l.b16 %v378
    %v725 = vunpack.c.h.b16 %v378
    %v726 = vunpack.c.l.b16 %v379
    %v727 = vunpack.c.h.b16 %v379
    %v728 = vunpack.c.l.b16 %v380
    %v729 = vunpack.c.h.b16 %v380
    %v730 = vunpack.c.l.b16 %v381
    %v731 = vunpack.c.h.b16 %v381
    %v732 = vunpack.c.l.b16 %v382
    %v733 = vunpack.c.h.b16 %v382
    %v734 = vunpack.c.l.b16 %v383
    %v735 = vunpack.c.h.b16 %v383
    %v736 = vunpack.c.l.b16 %v384
    %v737 = vunpack.c.h.b16 %v384
    %v738 = vunpack.c.l.b16 %v385
    %v739 = vunpack.c.h.b16 %v385
    %v740 = vunpack.c.l.b16 %v386
    %v741 = vunpack.c.h.b16 %v386
    %v742 = vunpack.c.l.b16 %v387
    %v743 = vunpack.c.h.b16 %v387
    %v744 = vunpack.c.l.b16 %v388
    %v745 = vunpack.c.h.b16 %v388
    %v746 = vunpack.c.l.b16 %v389
    %v747 = vunpack.c.h.b16 %v389
    %v748 = vunpack.c.l.b16 %v390
    %v749 = vunpack.c.h.b16 %v390
    %v750 = vunpack.c.l.b16 %v391
    %v751 = vunpack.c.h.b16 %v391
    %v752 = vunpack.c.l.b16 %v392
    %v753 = vunpack.c.h.b16 %v392
    %v754 = vunpack.c.l.b16 %v393
    %v755 = vunpack.c.h.b16 %v393
    %v756 = vunpack.c.l.b16 %v394
    %v757 = vunpack.c.h.b16 %v394
    %v758 = vunpack.c.l.b16 %v395
    %v759 = vunpack.c.h.b16 %v395
    %v760 = vunpack.c.l.b16 %v396
    %v761 = vunpack.c.h.b16 %v396
    %v762 = vunpack.c.l.b16 %v397
    %v763 = vunpack.c.h.b16 %v397
    %v764 = vunpack.c.l.b16 %v398
    %v765 = vunpack.c.h.b16 %v398
    %v766 = vunpack.c.l.b16 %v399
    %v767 = vunpack.c.h.b16 %v399
    %v768 = vunpack.c.l.b16 %v400
    %v769 = vunpack.c.h.b16 %v400
    %v770 = vunpack.c.l.b16 %v401
    %v771 = vunpack.c.h.b16 %v401
    %v772 = vunpack.c.l.b16 %v402
    %v773 = vunpack.c.h.b16 %v402
    %v774 = vunpack.c.l.b16 %v403
    %v775 = vunpack.c.h.b16 %v403
    %v776 = vunpack.c.l.b16 %v404
    %v777 = vunpack.c.h.b16 %v404
    %v778 = vunpack.c.l.b16 %v405
    %v779 = vunpack.c.h.b16 %v405
    %v780 = vunpack.c.l.b16 %v406
    %v781 = vunpack.c.h.b16 %v406
    %v782 = vunpack.c.l.b16 %v407
    %v783 = vunpack.c.h.b16 %v407
    %v784 = vunpack.c.l.b16 %v408
    %v785 = vunpack.c.h.b16 %v408
    %v786 = vunpack.c.l.b16 %v409
    %v787 = vunpack.c.h.b16 %v409
    %v788 = vunpack.c.l.b16 %v410
    %v789 = vunpack.c.h.b16 %v410
    %v790 = vunpack.c.l.b16 %v411
    %v791 = vunpack.c.h.b16 %v411
    %v792 = vunpack.c.l.b16 %v412
    %v793 = vunpack.c.h.b16 %v412
    %v794 = vunpack.c.l.b16 %v413
    %v795 = vunpack.c.h.b16 %v413
    %v796 = vunpack.c.l.b16 %v414
    %v797 = vunpack.c.h.b16 %v414
    %v798 = vunpack.c.l.b16 %v415
    %v799 = vunpack.c.h.b16 %v415
    %v800 = vunpack.c.l.b16 %v416
    %v801 = vunpack.c.h.b16 %v416
    %v802 = vunpack.c.l.b16 %v417
    %v803 = vunpack.c.h.b16 %v417
    %v804 = vunpack.c.l.b16 %v418
    %v805 = vunpack.c.h.b16 %v418
    %v806 = vunpack.c.l.b16 %v419
    %v807 = vunpack.c.h.b16 %v419
    %v808 = vunpack.c.l.b16 %v420
    %v809 = vunpack.c.h.b16 %v420
    %v810 = vunpack.c.l.b16 %v421
    %v811 = vunpack.c.h.b16 %v421
    %v812 = vunpack.c.l.b16 %v422
    %v813 = vunpack.c.h.b16 %v422
    %v814 = vunpack.c.l.b16 %v423
    %v815 = vunpack.c.h.b16 %v423
    %v816 = vunpack.c.l.b16 %v424
    %v817 = vunpack.c.h.b16 %v424
    %v818 = vunpack.c.l.b16 %v425
    %v819 = vunpack.c.h.b16 %v425
    %v820 = vunpack.c.l.b16 %v426
    %v821 = vunpack.c.h.b16 %v426
    %v822 = vunpack.c.l.b16 %v427
    %v823 = vunpack.c.h.b16 %v427
    %v824 = vpack.c.b16 %v570, %v568
    %v825 = vpack.c.b16 %v571, %v569
    %v826 = vpack.c.b16 %v574, %v572
    %v827 = vpack.c.b16 %v575, %v573
    %v828 = vpack.c.b16 %v578, %v576
    %v829 = vpack.c.b16 %v579, %v577
    %v830 = vpack.c.b16 %v582, %v580
    %v831 = vpack.c.b16 %v583, %v581
    %v832 = vpack.c.b16 %v586, %v584
    %v833 = vpack.c.b16 %v587, %v585
    %v834 = vpack.c.b16 %v590, %v588
    %v835 = vpack.c.b16 %v591, %v589
    %v836 = vpack.c.b16 %v594, %v592
    %v837 = vpack.c.b16 %v595, %v593
    %v838 = vpack.c.b16 %v598, %v596
    %v839 = vpack.c.b16 %v599, %v597
    %v840 = vpack.c.b16 %v602, %v600
    %v841 = vpack.c.b16 %v603, %v601
    %v842 = vpack.c.b16 %v606, %v604
    %v843 = vpack.c.b16 %v607, %v605
    %v844 = vpack.c.b16 %v610, %v608
    %v845 = vpack.c.b16 %v611, %v609
    %v846 = vpack.c.b16 %v614, %v612
    %v847 = vpack.c.b16 %v615, %v613
    %v848 = vpack.c.b16 %v618, %v616
    %v849 = vpack.c.b16 %v619, %v617
    %v850 = vpack.c.b16 %v622, %v620
    %v851 = vpack.c.b16 %v623, %v621
    %v852 = vpack.c.b16 %v626, %v624
    %v853 = vpack.c.b16 %v627, %v625
    %v854 = vpack.c.b16 %v630, %v628
    %v855 = vpack.c.b16 %v631, %v629
    %v856 = vpack.c.b16 %v634, %v632
    %v857 = vpack.c.b16 %v635, %v633
    %v858 = vpack.c.b16 %v638, %v636
    %v859 = vpack.c.b16 %v639, %v637
    %v860 = vpack.c.b16 %v642, %v640
    %v861 = vpack.c.b16 %v643, %v641
    %v862 = vpack.c.b16 %v646, %v644
    %v863 = vpack.c.b16 %v647, %v645
    %v864 = vpack.c.b16 %v650, %v648
    %v865 = vpack.c.b16 %v651, %v649
    %v866 = vpack.c.b16 %v654, %v652
    %v867 = vpack.c.b16 %v655, %v653
    %v868 = vpack.c.b16 %v658, %v656
    %v869 = vpack.c.b16 %v659, %v657
    %v870 = vpack.c.b16 %v662, %v660
    %v871 = vpack.c.b16 %v663, %v661
    %v872 = vpack.c.b16 %v666, %v664
    %v873 = vpack.c.b16 %v667, %v665
    %v874 = vpack.c.b16 %v670, %v668
    %v875 = vpack.c.b16 %v671, %v669
    %v876 = vpack.c.b16 %v674, %v672
    %v877 = vpack.c.b16 %v675, %v673
    %v878 = vpack.c.b16 %v678, %v676
    %v879 = vpack.c.b16 %v679, %v677
    %v880 = vpack.c.b16 %v682, %v680
    %v881 = vpack.c.b16 %v683, %v681
    %v882 = vpack.c.b16 %v686, %v684
    %v883 = vpack.c.b16 %v687, %v685
    %v884 = vpack.c.b16 %v690, %v688
    %v885 = vpack.c.b16 %v691, %v689
    %v886 = vpack.c.b16 %v694, %v692
    %v887 = vpack.c.b16 %v695, %v693
    %v888 = vpack.c.b16 %v698, %v696
    %v889 = vpack.c.b16 %v699, %v697
    %v890 = vpack.c.b16 %v702, %v700
    %v891 = vpack.c.b16 %v703, %v701
    %v892 = vpack.c.b16 %v706, %v704
    %v893 = vpack.c.b16 %v707, %v705
    %v894 = vpack.c.b16 %v710, %v708
    %v895 = vpack.c.b16 %v711, %v709
    %v896 = vpack.c.b16 %v714, %v712
    %v897 = vpack.c.b16 %v715, %v713
    %v898 = vpack.c.b16 %v718, %v716
    %v899 = vpack.c.b16 %v719, %v717
    %v900 = vpack.c.b16 %v722, %v720
    %v901 = vpack.c.b16 %v723, %v721
    %v902 = vpack.c.b16 %v726, %v724
    %v903 = vpack.c.b16 %v727, %v725
    %v904 = vpack.c.b16 %v730, %v728
    %v905 = vpack.c.b16 %v731, %v729
    %v906 = vpack.c.b16 %v734, %v732
    %v907 = vpack.c.b16 %v735, %v733
    %v908 = vpack.c.b16 %v738, %v736
    %v909 = vpack.c.b16 %v739, %v737
    %v910 = vpack.c.b16 %v742, %v740
    %v911 = vpack.c.b16 %v743, %v741
    %v912 = vpack.c.b16 %v746, %v744
    %v913 = vpack.c.b16 %v747, %v745
    %v914 = vpack.c.b16 %v750, %v748
    %v915 = vpack.c.b16 %v751, %v749
    %v916 = vpack.c.b16 %v754, %v752
    %v917 = vpack.c.b16 %v755, %v753
    %v918 = vpack.c.b16 %v758, %v756
    %v919 = vpack.c.b16 %v759, %v757
    %v920 = vpack.c.b16 %v762, %v760
    %v921 = vpack.c.b16 %v763, %v761
    %v922 = vpack.c.b16 %v766, %v764
    %v923 = vpack.c.b16 %v767, %v765
    %v924 = vpack.c.b16 %v770, %v768
    %v925 = vpack.c.b16 %v771, %v769
    %v926 = vpack.c.b16 %v774, %v772
    %v927 = vpack.c.b16 %v775, %v773
    %v928 = vpack.c.b16 %v778, %v776
    %v929 = vpack.c.b16 %v779, %v777
    %v930 = vpack.c.b16 %v782, %v780
    %v931 = vpack.c.b16 %v783, %v781
    %v932 = vpack.c.b16 %v786, %v784
    %v933 = vpack.c.b16 %v787, %v785
    %v934 = vpack.c.b16 %v790, %v788
    %v935 = vpack.c.b16 %v791, %v789
    %v936 = vpack.c.b16 %v794, %v792
    %v937 = vpack.c.b16 %v795, %v793
    %v938 = vpack.c.b16 %v798, %v796
    %v939 = vpack.c.b16 %v799, %v797
    %v940 = vpack.c.b16 %v802, %v800
    %v941 = vpack.c.b16 %v803, %v801
    %v942 = vpack.c.b16 %v806, %v804
    %v943 = vpack.c.b16 %v807, %v805
    %v944 = vpack.c.b16 %v810, %v808
    %v945 = vpack.c.b16 %v811, %v809
    %v946 = vpack.c.b16 %v814, %v812
    %v947 = vpack.c.b16 %v815, %v813
    %v948 = vpack.c.b16 %v818, %v816
    %v949 = vpack.c.b16 %v819, %v817
    %v950 = vpack.c.b16 %v822, %v820
    %v951 = vpack.c.b16 %v823, %v821
    %1080 = vmatprep.subr.bf16.mxu0 %v825
    %1081 = vmatpush1.bf16.msra.mxu0 %v824
    %1082 = vmatprep.subr.bf16.mxu0 %v827
    %1083 = vmatpush1.bf16.msra.mxu0 %v826
    %1084 = vmatprep.subr.bf16.mxu0 %v829
    %1085 = vmatpush1.bf16.msra.mxu0 %v828
    %1086 = vmatprep.subr.bf16.mxu0 %v831
    %1087 = vmatpush1.bf16.msra.mxu0 %v830
    %1088 = vmatprep.subr.bf16.mxu0 %v833
    %1089 = vmatpush1.bf16.msra.mxu0 %v832
    %1090 = vmatprep.subr.bf16.mxu0 %v835
    %1091 = vmatpush1.bf16.msra.mxu0 %v834
    %1092 = vmatprep.subr.bf16.mxu0 %v837
    %1093 = vmatpush1.bf16.msra.mxu0 %v836
    %1094 = vmatprep.subr.bf16.mxu0 %v839
    %1095 = vmatpush1.bf16.msra.mxu0 %v838
    %1096 = vmatprep.subr.bf16.mxu0 %v841
    %1097 = vmatpush1.bf16.msra.mxu0 %v840
    %1098 = vmatprep.subr.bf16.mxu0 %v843
    %1099 = vmatpush1.bf16.msra.mxu0 %v842
    %1100 = vmatprep.subr.bf16.mxu0 %v845
    %1101 = vmatpush1.bf16.msra.mxu0 %v844
    %1102 = vmatprep.subr.bf16.mxu0 %v847
    %1103 = vmatpush1.bf16.msra.mxu0 %v846
    %1104 = vmatprep.subr.bf16.mxu0 %v849
    %1105 = vmatpush1.bf16.msra.mxu0 %v848
    %1106 = vmatprep.subr.bf16.mxu0 %v851
    %1107 = vmatpush1.bf16.msra.mxu0 %v850
    %1108 = vmatprep.subr.bf16.mxu0 %v853
    %1109 = vmatpush1.bf16.msra.mxu0 %v852
    %1110 = vmatprep.subr.bf16.mxu0 %v855
    %1111 = vmatpush1.bf16.msra.mxu0 %v854
    %1112 = vmatprep.mubr.bf16.mxu0 %v285
    %1113 = vmatmul.mubr.bf16.gmra.mrb[0].mxu0 %v284
    %v1114 = vpop.f32.mrb[0].mxu0
    %v1115 = vadd.f32 %v433, %v1114
    %v1116 = vpop.f32.mrb[0].mxu0
    %v1117 = vadd.f32 %v437, %v1116
    %v1118 = vpop.f32.mrb[0].mxu0
    %v1119 = vadd.f32 %v433, %v1118
    %v1120 = vpop.f32.mrb[0].mxu0
    %v1121 = vadd.f32 %v437, %v1120
    %1122 = vmatprep.mubr.bf16.mxu0 %v293
    %1123 = vmatmul.mubr.bf16.gmra.mrb[0].mxu0 %v292
    %v1124 = vpop.f32.mrb[0].mxu0
    %v1125 = vadd.f32 %v433, %v1124
    %v1126 = vpop.f32.mrb[0].mxu0
    %v1127 = vadd.f32 %v437, %v1126
    %v1128 = vpop.f32.mrb[0].mxu0
    %v1129 = vadd.f32 %v433, %v1128
    %v1130 = vpop.f32.mrb[0].mxu0
    %v1131 = vadd.f32 %v437, %v1130
    %1132 = vdwg.mxu0
    %1133 = vmatprep.subr.bf16.mxu0 %v857
    %1134 = vmatpush1.bf16.msra.mxu0 %v856
    %1135 = vmatprep.subr.bf16.mxu0 %v859
    %1136 = vmatpush1.bf16.msra.mxu0 %v858
    %1137 = vmatprep.subr.bf16.mxu0 %v861
    %1138 = vmatpush1.bf16.msra.mxu0 %v860
    %1139 = vmatprep.subr.bf16.mxu0 %v863
    %1140 = vmatpush1.bf16.msra.mxu0 %v862
    %1141 = vmatprep.subr.bf16.mxu0 %v865
    %1142 = vmatpush1.bf16.msra.mxu0 %v864
    %1143 = vmatprep.subr.bf16.mxu0 %v867
    %1144 = vmatpush1.bf16.msra.mxu0 %v866
    %1145 = vmatprep.subr.bf16.mxu0 %v869
    %1146 = vmatpush1.bf16.msra.mxu0 %v868
    %1147 = vmatprep.subr.bf16.mxu0 %v871
    %1148 = vmatpush1.bf16.msra.mxu0 %v870
    %1149 = vmatprep.subr.bf16.mxu0 %v873
    %1150 = vmatpush1.bf16.msra.mxu0 %v872
    %1151 = vmatprep.subr.bf16.mxu0 %v875
    %1152 = vmatpush1.bf16.msra.mxu0 %v874
    %1153 = vmatprep.subr.bf16.mxu0 %v877
    %1154 = vmatpush1.bf16.msra.mxu0 %v876
    %1155 = vmatprep.subr.bf16.mxu0 %v879
    %1156 = vmatpush1.bf16.msra.mxu0 %v878
    %1157 = vmatprep.subr.bf16.mxu0 %v881
    %1158 = vmatpush1.bf16.msra.mxu0 %v880
    %1159 = vmatprep.subr.bf16.mxu0 %v883
    %1160 = vmatpush1.bf16.msra.mxu0 %v882
    %1161 = vmatprep.subr.bf16.mxu0 %v885
    %1162 = vmatpush1.bf16.msra.mxu0 %v884
    %1163 = vmatprep.subr.bf16.mxu0 %v887
    %1164 = vmatpush1.bf16.msra.mxu0 %v886
    %1165 = vmatprep.mubr.bf16.mxu0 %v287
    %1166 = vmatmul.mubr.bf16.gmra.mrb[0].mxu0 %v286
    %v1167 = vpop.f32.mrb[0].mxu0
    %v1168 = vadd.f32 %v1115, %v1167
    %v1169 = vpop.f32.mrb[0].mxu0
    %v1170 = vadd.f32 %v1117, %v1169
    %v1171 = vpop.f32.mrb[0].mxu0
    %v1172 = vadd.f32 %v1119, %v1171
    %v1173 = vpop.f32.mrb[0].mxu0
    %v1174 = vadd.f32 %v1121, %v1173
    %1175 = vmatprep.mubr.bf16.mxu0 %v295
    %1176 = vmatmul.mubr.bf16.gmra.mrb[0].mxu0 %v294
    %v1177 = vpop.f32.mrb[0].mxu0
    %v1178 = vadd.f32 %v1125, %v1177
    %v1179 = vpop.f32.mrb[0].mxu0
    %v1180 = vadd.f32 %v1127, %v1179
    %v1181 = vpop.f32.mrb[0].mxu0
    %v1182 = vadd.f32 %v1129, %v1181
    %v1183 = vpop.f32.mrb[0].mxu0
    %v1184 = vadd.f32 %v1131, %v1183
    %1185 = vdwg.mxu0
    %1186 = vmatprep.subr.bf16.mxu0 %v889
    %1187 = vmatpush1.bf16.msra.mxu0 %v888
    %1188 = vmatprep.subr.bf16.mxu0 %v891
    %1189 = vmatpush1.bf16.msra.mxu0 %v890
    %1190 = vmatprep.subr.bf16.mxu0 %v893
    %1191 = vmatpush1.bf16.msra.mxu0 %v892
    %1192 = vmatprep.subr.bf16.mxu0 %v895
    %1193 = vmatpush1.bf16.msra.mxu0 %v894
    %1194 = vmatprep.subr.bf16.mxu0 %v897
    %1195 = vmatpush1.bf16.msra.mxu0 %v896
    %1196 = vmatprep.subr.bf16.mxu0 %v899
    %1197 = vmatpush1.bf16.msra.mxu0 %v898
    %1198 = vmatprep.subr.bf16.mxu0 %v901
    %1199 = vmatpush1.bf16.msra.mxu0 %v900
    %1200 = vmatprep.subr.bf16.mxu0 %v903
    %1201 = vmatpush1.bf16.msra.mxu0 %v902
    %1202 = vmatprep.subr.bf16.mxu0 %v905
    %1203 = vmatpush1.bf16.msra.mxu0 %v904
    %1204 = vmatprep.subr.bf16.mxu0 %v907
    %1205 = vmatpush1.bf16.msra.mxu0 %v906
    %1206 = vmatprep.subr.bf16.mxu0 %v909
    %1207 = vmatpush1.bf16.msra.mxu0 %v908
    %1208 = vmatprep.subr.bf16.mxu0 %v911
    %1209 = vmatpush1.bf16.msra.mxu0 %v910
    %1210 = vmatprep.subr.bf16.mxu0 %v913
    %1211 = vmatpush1.bf16.msra.mxu0 %v912
    %1212 = vmatprep.subr.bf16.mxu0 %v915
    %1213 = vmatpush1.bf16.msra.mxu0 %v914
    %1214 = vmatprep.subr.bf16.mxu0 %v917
    %1215 = vmatpush1.bf16.msra.mxu0 %v916
    %1216 = vmatprep.subr.bf16.mxu0 %v919
    %1217 = vmatpush1.bf16.msra.mxu0 %v918
    %1218 = vmatprep.mubr.bf16.mxu0 %v289
    %1219 = vmatmul.mubr.bf16.gmra.mrb[0].mxu0 %v288
    %v1220 = vpop.f32.mrb[0].mxu0
    %v1221 = vadd.f32 %v1168, %v1220
    %v1222 = vpop.f32.mrb[0].mxu0
    %v1223 = vadd.f32 %v1170, %v1222
    %v1224 = vpop.f32.mrb[0].mxu0
    %v1225 = vadd.f32 %v1172, %v1224
    %v1226 = vpop.f32.mrb[0].mxu0
    %v1227 = vadd.f32 %v1174, %v1226
    %1228 = vmatprep.mubr.bf16.mxu0 %v297
    %1229 = vmatmul.mubr.bf16.gmra.mrb[0].mxu0 %v296
    %v1230 = vpop.f32.mrb[0].mxu0
    %v1231 = vadd.f32 %v1178, %v1230
    %v1232 = vpop.f32.mrb[0].mxu0
    %v1233 = vadd.f32 %v1180, %v1232
    %v1234 = vpop.f32.mrb[0].mxu0
    %v1235 = vadd.f32 %v1182, %v1234
    %v1236 = vpop.f32.mrb[0].mxu0
    %v1237 = vadd.f32 %v1184, %v1236
    %1238 = vdwg.mxu0
    %1239 = vmatprep.subr.bf16.mxu0 %v921
    %1240 = vmatpush1.bf16.msra.mxu0 %v920
    %1241 = vmatprep.subr.bf16.mxu0 %v923
    %1242 = vmatpush1.bf16.msra.mxu0 %v922
    %1243 = vmatprep.subr.bf16.mxu0 %v925
    %1244 = vmatpush1.bf16.msra.mxu0 %v924
    %1245 = vmatprep.subr.bf16.mxu0 %v927
    %1246 = vmatpush1.bf16.msra.mxu0 %v926
    %1247 = vmatprep.subr.bf16.mxu0 %v929
    %1248 = vmatpush1.bf16.msra.mxu0 %v928
    %1249 = vmatprep.subr.bf16.mxu0 %v931
    %1250 = vmatpush1.bf16.msra.mxu0 %v930
    %1251 = vmatprep.subr.bf16.mxu0 %v933
    %1252 = vmatpush1.bf16.msra.mxu0 %v932
    %1253 = vmatprep.subr.bf16.mxu0 %v935
    %1254 = vmatpush1.bf16.msra.mxu0 %v934
    %1255 = vmatprep.subr.bf16.mxu0 %v937
    %1256 = vmatpush1.bf16.msra.mxu0 %v936
    %1257 = vmatprep.subr.bf16.mxu0 %v939
    %1258 = vmatpush1.bf16.msra.mxu0 %v938
    %1259 = vmatprep.subr.bf16.mxu0 %v941
    %1260 = vmatpush1.bf16.msra.mxu0 %v940
    %1261 = vmatprep.subr.bf16.mxu0 %v943
    %1262 = vmatpush1.bf16.msra.mxu0 %v942
    %1263 = vmatprep.subr.bf16.mxu0 %v945
    %1264 = vmatpush1.bf16.msra.mxu0 %v944
    %1265 = vmatprep.subr.bf16.mxu0 %v947
    %1266 = vmatpush1.bf16.msra.mxu0 %v946
    %1267 = vmatprep.subr.bf16.mxu0 %v949
    %1268 = vmatpush1.bf16.msra.mxu0 %v948
    %1269 = vmatprep.subr.bf16.mxu0 %v951
    %1270 = vmatpush1.bf16.msra.mxu0 %v950
    %1271 = vmatprep.mubr.bf16.mxu0 %v291
    %1272 = vmatmul.mubr.bf16.gmra.mrb[0].mxu0 %v290
    %v1273 = vpop.f32.mrb[0].mxu0
    %v1274 = vadd.f32 %v1221, %v1273
    %v1275 = vpop.f32.mrb[0].mxu0
    %v1276 = vadd.f32 %v1223, %v1275
    %v1277 = vpop.f32.mrb[0].mxu0
    %v1278 = vadd.f32 %v1225, %v1277
    %v1279 = vpop.f32.mrb[0].mxu0
    %v1280 = vadd.f32 %v1227, %v1279
    %1281 = vmatprep.mubr.bf16.mxu0 %v299
    %1282 = vmatmul.mubr.bf16.gmra.mrb[0].mxu0 %v298
    %v1283 = vpop.f32.mrb[0].mxu0
    %v1284 = vadd.f32 %v1231, %v1283
    %v1285 = vpop.f32.mrb[0].mxu0
    %v1286 = vadd.f32 %v1233, %v1285
    %v1287 = vpop.f32.mrb[0].mxu0
    %v1288 = vadd.f32 %v1235, %v1287
    %v1289 = vpop.f32.mrb[0].mxu0
    %v1290 = vadd.f32 %v1237, %v1289
    %1291 = vdwg.mxu0
    %1292 = vst [vmem:[%s3] sm:$0xff] %v1274
    %1293 = vst [vmem:[%s3 + $0x8] sm:$0xff] %v1276
    %1294 = vst [vmem:[%s3 + $0x10] sm:$0xff] %v1278
    %1295 = vst [vmem:[%s3 + $0x18] sm:$0xff] %v1280
    %1296 = vst [vmem:[%s3 + $0x20] sm:$0xff] %v1284
    %1297 = vst [vmem:[%s3 + $0x28] sm:$0xff] %v1286
    %1298 = vst [vmem:[%s3 + $0x30] sm:$0xff] %v1288
    %1299 = vst [vmem:[%s3 + $0x38] sm:$0xff] %v1290
    // Predicated region
    $region18: #{soundnet_encoding_conv_forward.1} parent=1 // pred_check
      _
    $region19: #{soundnet_encoding_conv_forward.1} parent=1 // pred_check_branch
      %1301 = sbr.rel (0) target = $region21
    $region20: #{soundnet_encoding_conv_forward.1} parent=1 // pred_region
      _
    $region21: #{soundnet_encoding_conv_forward.1} parent=1 // pred_fallthru
      _
    // Predicated region
    $region22: #{soundnet_encoding_conv_forward.1} parent=1 // pred_check
      _
    $region23: #{soundnet_encoding_conv_forward.1} parent=1 // pred_check_branch
      %1303 = sbr.rel (0) target = $region25
    $region24: #{soundnet_encoding_conv_forward.1} parent=1 // pred_region
      _
    $region25: #{soundnet_encoding_conv_forward.1} parent=1 // pred_fallthru
      _
    %1304 = vsyncpa [#allocation3], 1

</llo_original>
